<compile_context>
chip_gen: v7x
topology: tpu7x:2x2x1
jax: 0.10.0
libtpu: 0.0.40
codegen_flags: <defaults>
</compile_context>

<pallas_src>
import functools
import math

import jax
import jax.numpy as jnp
from jax.experimental import pallas as pl
from jax.experimental.pallas import tpu as pltpu

NEG_INF = -1e30
LN_EPS = 1e-5
VMEM_LIMIT = 48 * 1024 * 1024   # <= v7x 64 MiB cap, plenty on v5e/v6e


def _round_up(x, m):
    return ((x + m - 1) // m) * m


def _tile_and_pad(dim, max_tile, quantum):
    """Pick a large TPU-friendly tile (multiple of `quantum`) and pad dim to a multiple of it.

    For dims > max_tile we search tiles in [max_tile/2, max_tile] minimizing padding,
    so the tile never collapses to the quantum (fixes the tm=8 / tk=128 degenerate case).
    """
    if dim <= max_tile:
        t = _round_up(dim, quantum)
        return t, t
    best_tile, best_pad = max_tile, _round_up(dim, max_tile)
    t = max_tile - quantum
    while t >= max(quantum, max_tile // 2):
        p = _round_up(dim, t)
        if p < best_pad:
            best_pad, best_tile = p, t
        t -= quantum
    return best_tile, best_pad


# ----------------------------------------------------------------------------
# Tiled linear: y = x @ w + b  (bf16 operands, f32 VMEM accumulator)
#   - optional ReLU epilogue
#   - optional fused residual-add + LayerNorm epilogue (N kept in one tile)
# ----------------------------------------------------------------------------
def _linear_kernel(x_ref, w_ref, b_ref, o_ref, acc_ref, *, activation):
    @pl.when(pl.program_id(2) == 0)
    def _init():
        acc_ref[...] = jnp.zeros_like(acc_ref)

    acc_ref[...] += jnp.dot(x_ref[...], w_ref[...], preferred_element_type=jnp.float32)

    @pl.when(pl.program_id(2) == pl.num_programs(2) - 1)
    def _finalize():
        y = acc_ref[...] + b_ref[...]
        if activation == "relu":
            y = jnp.maximum(y, 0.0)
        o_ref[...] = y.astype(o_ref.dtype)


def _linear_res_ln_kernel(x_ref, w_ref, b_ref, r_ref, g_ref, beta_ref,
                          o_ref, acc_ref, *, n_valid):
    @pl.when(pl.program_id(1) == 0)
    def _init():
        acc_ref[...] = jnp.zeros_like(acc_ref)

    acc_ref[...] += jnp.dot(x_ref[...], w_ref[...], preferred_element_type=jnp.float32)

    @pl.when(pl.program_id(1) == pl.num_programs(1) - 1)
    def _finalize():
        y = acc_ref[...] + b_ref[...] + r_ref[...].astype(jnp.float32)
        n_pad = y.shape[-1]
        if n_valid == n_pad:
            mu = jnp.mean(y, axis=-1, keepdims=True)
            d = y - mu
            var = jnp.mean(d * d, axis=-1, keepdims=True)
        else:
            # Column-padded N: LayerNorm statistics over the valid columns only.
            col = jax.lax.broadcasted_iota(jnp.int32, y.shape, 1)
            valid = col < n_valid
            inv_n = 1.0 / n_valid
            mu = jnp.sum(jnp.where(valid, y, 0.0), axis=-1, keepdims=True) * inv_n
            d = jnp.where(valid, y - mu, 0.0)
            var = jnp.sum(d * d, axis=-1, keepdims=True) * inv_n
        yn = (y - mu) * jax.lax.rsqrt(var + LN_EPS)
        o_ref[...] = (yn * g_ref[...] + beta_ref[...]).astype(o_ref.dtype)


def pallas_linear(x, w, b, *, activation="none", out_dtype=jnp.bfloat16,
                  residual=None, ln_g=None, ln_b=None):
    """x:(M,K), w:(K,N), b:(N,) -> (M,N).

    If residual/ln_g/ln_b are given, returns LayerNorm(x@w + b + residual) fused in
    the matmul epilogue (requires keeping N in a single tile).
    """
    M, K = x.shape
    N = w.shape[1]
    fuse_ln = residual is not None
    x = x.astype(jnp.bfloat16)
    w = w.astype(jnp.bfloat16)
    b = b.astype(jnp.float32)

    tm, Mp = _tile_and_pad(M, 512, 8)
    tk, Kp = _tile_and_pad(K, 1024, 128)
    if fuse_ln:
        Np = _round_up(N, 128)
        tn = Np
    else:
        tn, Np = _tile_and_pad(N, 512, 128)

    xp = x if (Mp == M and Kp == K) else jnp.pad(x, ((0, Mp - M), (0, Kp - K)))
    wp = w if (Kp == K and Np == N) else jnp.pad(w, ((0, Kp - K), (0, Np - N)))
    bp = (b if Np == N else jnp.pad(b, (0, Np - N))).reshape(1, Np)

    if fuse_ln:
        r = residual.astype(jnp.bfloat16)
        rp = r if (Mp == M and Np == N) else jnp.pad(r, ((0, Mp - M), (0, Np - N)))
        gp = (ln_g.astype(jnp.float32) if Np == N
              else jnp.pad(ln_g.astype(jnp.float32), (0, Np - N))).reshape(1, Np)
        betap = (ln_b.astype(jnp.float32) if Np == N
                 else jnp.pad(ln_b.astype(jnp.float32), (0, Np - N))).reshape(1, Np)
        out = pl.pallas_call(
            functools.partial(_linear_res_ln_kernel, n_valid=N),
            out_shape=jax.ShapeDtypeStruct((Mp, Np), out_dtype),
            grid=(Mp // tm, Kp // tk),
            in_specs=[
                pl.BlockSpec((tm, tk), lambda i, k: (i, k)),
                pl.BlockSpec((tk, Np), lambda i, k: (k, 0)),
                pl.BlockSpec((1, Np), lambda i, k: (0, 0)),
                pl.BlockSpec((tm, Np), lambda i, k: (i, 0)),
                pl.BlockSpec((1, Np), lambda i, k: (0, 0)),
                pl.BlockSpec((1, Np), lambda i, k: (0, 0)),
            ],
            out_specs=pl.BlockSpec((tm, Np), lambda i, k: (i, 0)),
            scratch_shapes=[pltpu.VMEM((tm, Np), jnp.float32)],
            compiler_params=pltpu.CompilerParams(
                dimension_semantics=("parallel", "arbitrary"),
                vmem_limit_bytes=VMEM_LIMIT),
        )(xp, wp, bp, rp, gp, betap)
    else:
        out = pl.pallas_call(
            functools.partial(_linear_kernel, activation=activation),
            out_shape=jax.ShapeDtypeStruct((Mp, Np), out_dtype),
            grid=(Mp // tm, Np // tn, Kp // tk),
            in_specs=[
                pl.BlockSpec((tm, tk), lambda i, j, k: (i, k)),
                pl.BlockSpec((tk, tn), lambda i, j, k: (k, j)),
                pl.BlockSpec((1, tn), lambda i, j, k: (0, j)),
            ],
            out_specs=pl.BlockSpec((tm, tn), lambda i, j, k: (i, j)),
            scratch_shapes=[pltpu.VMEM((tm, tn), jnp.float32)],
            compiler_params=pltpu.CompilerParams(
                dimension_semantics=("parallel", "parallel", "arbitrary"),
                vmem_limit_bytes=VMEM_LIMIT),
        )(xp, wp, bp)

    if Mp != M or Np != N:
        out = out[:M, :N]
    return out


# ----------------------------------------------------------------------------
# Attention: one (batch, head) per grid step, contiguous (T,dh)/(S,dh) blocks,
# masks built / streamed in-kernel, f32 scores, bf16 outputs.
# pl.reciprocal(approx=True) is used in the softmax normalization (EUP path);
# the small relative error is acceptable for inference.
# TODO(synk): for very long T/S, switch to a flash-style KV-chunked online-softmax
#             loop so the (T,S) f32 score tile stays within v7x's 64 MiB VMEM.
# ----------------------------------------------------------------------------
def _self_attn_kernel(qkv_ref, o_ref):
    # qkv_ref: (3, T, dh) bf16 for one (batch, head); o_ref: (T, dh)
    q = qkv_ref[0]
    k = qkv_ref[1]
    v = qkv_ref[2]
    T = q.shape[0]
    s = jax.lax.dot_general(q, k, (((1,), (1,)), ((), ())),
                            preferred_element_type=jnp.float32)          # (T, T)
    row = jax.lax.broadcasted_iota(jnp.int32, (T, T), 0)
    col = jax.lax.broadcasted_iota(jnp.int32, (T, T), 1)
    s = jnp.where(col > row, NEG_INF, s)                                  # causal mask
    s = s - jnp.max(s, axis=-1, keepdims=True)
    p = jnp.exp(s)
    p = p * pl.reciprocal(jnp.sum(p, axis=-1, keepdims=True), approx=True)
    o_ref[...] = jnp.dot(p.astype(jnp.bfloat16), v,
                         preferred_element_type=jnp.float32).astype(o_ref.dtype)


def pallas_self_attention(qkv):
    """qkv: (B, H, 3, T, dh) bf16 -> (B, H, T, dh) bf16, causal."""
    B, H, _, T, dh = qkv.shape
    return pl.pallas_call(
        _self_attn_kernel,
        out_shape=jax.ShapeDtypeStruct((B, H, T, dh), jnp.bfloat16),
        grid=(B, H),
        in_specs=[pl.BlockSpec((None, None, 3, T, dh), lambda b, h: (b, h, 0, 0, 0))],
        out_specs=pl.BlockSpec((None, None, T, dh), lambda b, h: (b, h, 0, 0)),
        compiler_params=pltpu.CompilerParams(
            dimension_semantics=("parallel", "parallel"),
            vmem_limit_bytes=VMEM_LIMIT),
    )(qkv)


def _enc_attn_kernel(q_ref, kv_ref, bias_ref, o_ref):
    # q_ref: (T, dh); kv_ref: (2, S, dh); bias_ref: (1, S) additive key-pad bias
    q = q_ref[...]
    k = kv_ref[0]
    v = kv_ref[1]
    s = jax.lax.dot_general(q, k, (((1,), (1,)), ((), ())),
                            preferred_element_type=jnp.float32) + bias_ref[...]
    s = s - jnp.max(s, axis=-1, keepdims=True)
    p = jnp.exp(s)
    p = p * pl.reciprocal(jnp.sum(p, axis=-1, keepdims=True), approx=True)
    o_ref[...] = jnp.dot(p.astype(jnp.bfloat16), v,
                         preferred_element_type=jnp.float32).astype(o_ref.dtype)


def pallas_enc_attention(q, kv, pad_bias):
    """q: (B,H,T,dh), kv: (B,H,2,S,dh), pad_bias: (B,1,S) f32 -> (B,H,T,dh) bf16."""
    B, H, T, dh = q.shape
    S = kv.shape[3]
    return pl.pallas_call(
        _enc_attn_kernel,
        out_shape=jax.ShapeDtypeStruct((B, H, T, dh), jnp.bfloat16),
        grid=(B, H),
        in_specs=[
            pl.BlockSpec((None, None, T, dh), lambda b, h: (b, h, 0, 0)),
            pl.BlockSpec((None, None, 2, S, dh), lambda b, h: (b, h, 0, 0, 0)),
            pl.BlockSpec((None, 1, S), lambda b, h: (b, 0, 0)),
        ],
        out_specs=pl.BlockSpec((None, None, T, dh), lambda b, h: (b, h, 0, 0)),
        compiler_params=pltpu.CompilerParams(
            dimension_semantics=("parallel", "parallel"),
            vmem_limit_bytes=VMEM_LIMIT),
    )(q, kv, pad_bias)


# ----------------------------------------------------------------------------
# Model glue (head-layout transposes / reshapes in plain JAX)
# ----------------------------------------------------------------------------
def decoder_layer_forward(p, x_flat, enc_flat, enc_pad_bias, T, B, S, H, dh):
    """TransformerDecoderLayer.forward (normalize_before=False, eval mode).

    x_flat: (T*B, D) bf16 (rows in (T, B) order);  enc_flat: (S*B, D) bf16.
    """
    D = H * dh

    # --- masked self-attention (pre-fused QKV weights, scaling folded into Q) ---
    qkv = pallas_linear(x_flat, p["wqkv"], p["bqkv"])                    # (T*B, 3D)
    qkv = qkv.reshape(T, B, 3, H, dh).transpose(1, 3, 2, 0, 4)           # (B,H,3,T,dh)
    a = pallas_self_attention(qkv)                                       # (B,H,T,dh)
    a = a.transpose(2, 0, 1, 3).reshape(T * B, D)
    x_flat = pallas_linear(a, p["wo_self"], p["bo_self"],
                           residual=x_flat, ln_g=p["ln0_g"], ln_b=p["ln0_b"])

    # --- encoder-decoder attention (pre-fused KV projection of encoder output) ---
    q = pallas_linear(x_flat, p["wq_enc"], p["bq_enc"])                  # (T*B, D)
    q = q.reshape(T, B, H, dh).transpose(1, 2, 0, 3)                     # (B,H,T,dh)
    kv = pallas_linear(enc_flat, p["wkv_enc"], p["bkv_enc"])             # (S*B, 2D)
    kv = kv.reshape(S, B, 2, H, dh).transpose(1, 3, 2, 0, 4)             # (B,H,2,S,dh)
    a = pallas_enc_attention(q, kv, enc_pad_bias)                        # (B,H,T,dh)
    a = a.transpose(2, 0, 1, 3).reshape(T * B, D)
    x_flat = pallas_linear(a, p["wo_enc"], p["bo_enc"],
                           residual=x_flat, ln_g=p["ln1_g"], ln_b=p["ln1_b"])

    # --- feed-forward (ReLU fused in fc1 epilogue; residual+LN fused in fc2) ---
    h = pallas_linear(x_flat, p["fc1_w"], p["fc1_b"], activation="relu")
    x_flat = pallas_linear(h, p["fc2_w"], p["fc2_b"],
                           residual=x_flat, ln_g=p["ln2_g"], ln_b=p["ln2_b"])
    return x_flat


def sinusoidal_embedding(num_embeddings, dim, padding_idx):
    half = dim // 2
    freq = math.log(10000.0) / (half - 1)
    freq = jnp.exp(jnp.arange(half, dtype=jnp.float32) * -freq)
    ang = jnp.arange(num_embeddings, dtype=jnp.float32)[:, None] * freq[None, :]
    emb = jnp.concatenate([jnp.sin(ang), jnp.cos(ang)], axis=1)
    if dim % 2 == 1:
        emb = jnp.concatenate([emb, jnp.zeros((num_embeddings, 1), jnp.float32)], axis=1)
    emb = emb.at[padding_idx].set(0.0)
    return emb


def transformer_decoder_forward(prepared, cfg, encoder_out, encoder_padding_mask, y, lang_id):
    """TransformerDecoder.forward (eval, incremental_state=None, one_hot=False).

    y: (T, B) int32 tokens; encoder_out: (S, B, D) f32; padding mask: (B, S) bool.
    Returns logits (T, B, n_words[lang_id]) in f32.
    """
    T, B = y.shape
    S = encoder_out.shape[0]
    D = cfg["emb_dim"]
    H = cfg["heads"]
    dh = D // H
    embed_scale = math.sqrt(D)

    # Token embedding gather stays in plain JAX.
    emb_w = prepared["embeddings"][lang_id]                        # (V, D) f32
    x = embed_scale * jnp.take(emb_w, y, axis=0)                   # (T, B, D)

    # Sinusoidal positions (no target padding, left_pad=False): pos(t) = pad_index+1+t.
    positions = jax.lax.dynamic_slice(prepared["pos_table"],
                                      (cfg["pad_index"] + 1, 0), (T, D))
    x = (x + positions[:, None, :]).astype(jnp.bfloat16)
    # dropout(p=cfg.dropout) is identity in eval mode.

    x_flat = x.reshape(T * B, D)
    enc_flat = encoder_out.reshape(S * B, D).astype(jnp.bfloat16)

    # Encoder key-padding mask as a tiny additive bias (B, 1, S).
    enc_pad_bias = jnp.where(encoder_padding_mask, NEG_INF, 0.0).astype(jnp.float32)[:, None, :]

    for layer_langs in prepared["layers"]:
        x_flat = decoder_layer_forward(layer_langs[lang_id], x_flat, enc_flat,
                                       enc_pad_bias, T, B, S, H, dh)

    pw, pb = prepared["proj"][lang_id]
    logits = pallas_linear(x_flat, pw, pb, out_dtype=jnp.float32).reshape(T, B, -1)
    return logits


# ----------------------------------------------------------------------------
# Parameter initialization (f32 masters) and one-time inference prep
# (weight fusion, 1/sqrt(dh) fold, bf16 cast) — done once, outside the forward.
# ----------------------------------------------------------------------------
def _xavier(key, shape):
    fan_in, fan_out = shape
    limit = math.sqrt(6.0 / (fan_in + fan_out))
    return jax.random.uniform(key, shape, jnp.float32, -limit, limit)


def init_params(key, cfg):
    D, F, V_list = cfg["emb_dim"], cfg["ffn_dim"], cfg["n_words"]
    n_langs, n_layers = cfg["n_langs"], cfg["n_layers"]
    keys = iter(jax.random.split(key, 4096))

    def attn_params():
        return {
            "q_w": _xavier(next(keys), (D, D)), "q_b": jnp.zeros((D,), jnp.float32),
            "k_w": _xavier(next(keys), (D, D)), "k_b": jnp.zeros((D,), jnp.float32),
            "v_w": _xavier(next(keys), (D, D)), "v_b": jnp.zeros((D,), jnp.float32),
            "out_w": _xavier(next(keys), (D, D)), "out_b": jnp.zeros((D,), jnp.float32),
        }

    def layer_params():
        return {
            "self_attn": attn_params(),
            "enc_attn": attn_params(),
            "fc1_w": _xavier(next(keys), (D, F)), "fc1_b": jnp.zeros((F,), jnp.float32),
            "fc2_w": _xavier(next(keys), (F, D)), "fc2_b": jnp.zeros((D,), jnp.float32),
            "ln0_g": jnp.ones((D,), jnp.float32), "ln0_b": jnp.zeros((D,), jnp.float32),
            "ln1_g": jnp.ones((D,), jnp.float32), "ln1_b": jnp.zeros((D,), jnp.float32),
            "ln2_g": jnp.ones((D,), jnp.float32), "ln2_b": jnp.zeros((D,), jnp.float32),
        }

    embeddings = []
    for V in V_list:
        w = jax.random.normal(next(keys), (V, D), jnp.float32) * (D ** -0.5)
        w = w.at[cfg["pad_index"]].set(0.0)
        embeddings.append(w)

    layers = [[layer_params() for _ in range(n_langs)] for _ in range(n_layers)]
    proj = [(_xavier(next(keys), (D, V)), jnp.zeros((V,), jnp.float32)) for V in V_list]

    return {
        "embeddings": embeddings,
        "layers": layers,
        "proj": proj,
        "pos_table": sinusoidal_embedding(1024, D, cfg["pad_index"]),
    }


def prepare_params(params, cfg):
    """One-time inference prep: fold scaling into Q, fuse QKV / KV weights, cast to bf16."""
    D = cfg["emb_dim"]
    H = cfg["heads"]
    dh = D // H
    scaling = dh ** -0.5
    bf16 = jnp.bfloat16

    def prep_layer(p):
        sa, ea = p["self_attn"], p["enc_attn"]
        return {
            "wqkv": jnp.concatenate([sa["q_w"] * scaling, sa["k_w"], sa["v_w"]],
                                    axis=1).astype(bf16),
            "bqkv": jnp.concatenate([sa["q_b"] * scaling, sa["k_b"], sa["v_b"]], axis=0),
            "wo_self": sa["out_w"].astype(bf16), "bo_self": sa["out_b"],
            "wq_enc": (ea["q_w"] * scaling).astype(bf16), "bq_enc": ea["q_b"] * scaling,
            "wkv_enc": jnp.concatenate([ea["k_w"], ea["v_w"]], axis=1).astype(bf16),
            "bkv_enc": jnp.concatenate([ea["k_b"], ea["v_b"]], axis=0),
            "wo_enc": ea["out_w"].astype(bf16), "bo_enc": ea["out_b"],
            "fc1_w": p["fc1_w"].astype(bf16), "fc1_b": p["fc1_b"],
            "fc2_w": p["fc2_w"].astype(bf16), "fc2_b": p["fc2_b"],
            "ln0_g": p["ln0_g"], "ln0_b": p["ln0_b"],
            "ln1_g": p["ln1_g"], "ln1_b": p["ln1_b"],
            "ln2_g": p["ln2_g"], "ln2_b": p["ln2_b"],
        }

    return {
        "embeddings": params["embeddings"],
        "pos_table": params["pos_table"],
        "layers": [[prep_layer(p) for p in layer_langs] for layer_langs in params["layers"]],
        "proj": [(w.astype(bf16), b) for (w, b) in params["proj"]],
    }


# ----------------------------------------------------------------------------
if __name__ == "__main__":
    cfg = {
        "n_langs": 2,
        "n_words": [50, 60],
        "emb_dim": 32,
        "ffn_dim": 64,
        "heads": 4,
        "n_layers": 2,
        "pad_index": 1,
        "dropout": 0.1,   # identity in eval mode
    }
    T, B, S = 8, 2, 10
    lang_id = 0

    root = jax.random.PRNGKey(0)
    k_params, k_tok, k_enc = jax.random.split(root, 3)

    params = init_params(k_params, cfg)
    prepared = prepare_params(params, cfg)

    # prev_output_tokens, seq-first (T, B); avoid special indices
    y = jax.random.randint(k_tok, (T, B), 4, cfg["n_words"][lang_id]).astype(jnp.int32)
    # encoder_out['encoder_out']: (src_len, B, D); padding mask (B, src_len), True == pad
    encoder_out = jax.random.normal(k_enc, (S, B, cfg["emb_dim"]), jnp.float32)
    encoder_padding_mask = jnp.zeros((B, S), jnp.bool_).at[1, S - 2:].set(True)

    logits = transformer_decoder_forward(prepared, cfg, encoder_out,
                                         encoder_padding_mask, y, lang_id)
    logits = jax.block_until_ready(logits)

    assert logits.shape == (T, B, cfg["n_words"][lang_id]), logits.shape
    assert bool(jnp.all(jnp.isfinite(logits)))
    print("KERNEL_OK")
</pallas_src>

<mosaic_0001>
module attributes {stable_mosaic.version = 11 : i64} {
  func.func @_linear_kernel(%arg0: i32, %arg1: i32, %arg2: i32, %arg3: memref<16x128xbf16, #tpu.memory_space<vmem>>, %arg4: memref<128x128xbf16, #tpu.memory_space<vmem>>, %arg5: memref<1x128xf32, #tpu.memory_space<vmem>>, %arg6: memref<16x128xbf16, #tpu.memory_space<vmem>>, %arg7: memref<16x128xf32, #tpu.memory_space<vmem>>) attributes {dimension_semantics = [#tpu.dimension_semantics<parallel>, #tpu.dimension_semantics<parallel>, #tpu.dimension_semantics<arbitrary>], iteration_bounds = array<i64: 1, 1, 1>, scalar_prefetch = 0 : i64, scratch_operands = 1 : i64, tpu.core_type = #tpu.core_type<tc>, window_params = [{transform_indices = @transform_0, window_bounds = array<i64: 16, 128>}, {transform_indices = @transform_1, window_bounds = array<i64: 128, 128>}, {transform_indices = @transform_2, window_bounds = array<i64: 1, 128>}, {transform_indices = @transform_3, window_bounds = array<i64: 16, 128>}]} {
    %c0_i32 = arith.constant 0 : i32
    %0 = arith.cmpi eq, %arg2, %c0_i32 : i32
    %1 = arith.extui %0 : i1 to i32
    %c0_i32_0 = arith.constant 0 : i32
    %2 = arith.cmpi ne, %1, %c0_i32_0 : i32
    scf.if %2 {
      %cst_10 = arith.constant 0.000000e+00 : f32
      %12 = vector.broadcast %cst_10 : f32 to vector<16x128xf32>
      %c0_11 = arith.constant 0 : index
      %c0_12 = arith.constant 0 : index
      %13 = vector.load %arg7[%c0_11, %c0_12] : memref<16x128xf32, #tpu.memory_space<vmem>>, vector<16x128xf32>
      tpu.vector_store %arg7[%c0_11, %c0_12], %12 {strides = array<i32>} : memref<16x128xf32, #tpu.memory_space<vmem>>, vector<16x128xf32>,
    } else {
    }
    %c0 = arith.constant 0 : index
    %c0_1 = arith.constant 0 : index
    %3 = vector.load %arg7[%c0, %c0_1] : memref<16x128xf32, #tpu.memory_space<vmem>>, vector<16x128xf32>
    %c0_2 = arith.constant 0 : index
    %c0_3 = arith.constant 0 : index
    %4 = vector.load %arg3[%c0_2, %c0_3] : memref<16x128xbf16, #tpu.memory_space<vmem>>, vector<16x128xbf16>
    %c0_4 = arith.constant 0 : index
    %c0_5 = arith.constant 0 : index
    %5 = vector.load %arg4[%c0_4, %c0_5] : memref<128x128xbf16, #tpu.memory_space<vmem>>, vector<128x128xbf16>
    %cst = arith.constant dense<0.000000e+00> : vector<16x128xf32>
    %6 = tpu.matmul %4, %5, %cst {dimension_numbers = #tpu.dot_dimension_numbers<[1], [0], [0], [1], [0, 0, 1, 1], [], []>} : vector<16x128xbf16>, vector<128x128xbf16>, vector<16x128xf32> -> vector<16x128xf32>
    %7 = arith.addf %3, %6 : vector<16x128xf32>
    %c0_6 = arith.constant 0 : index
    %c0_7 = arith.constant 0 : index
    %8 = vector.load %arg7[%c0_6, %c0_7] : memref<16x128xf32, #tpu.memory_space<vmem>>, vector<16x128xf32>
    tpu.vector_store %arg7[%c0_6, %c0_7], %7 {strides = array<i32>} : memref<16x128xf32, #tpu.memory_space<vmem>>, vector<16x128xf32>,
    %c0_i32_8 = arith.constant 0 : i32
    %9 = arith.cmpi eq, %arg2, %c0_i32_8 : i32
    %10 = arith.extui %9 : i1 to i32
    %c0_i32_9 = arith.constant 0 : i32
    %11 = arith.cmpi ne, %10, %c0_i32_9 : i32
    scf.if %11 {
      %c0_10 = arith.constant 0 : index
      %c0_11 = arith.constant 0 : index
      %12 = vector.load %arg7[%c0_10, %c0_11] : memref<16x128xf32, #tpu.memory_space<vmem>>, vector<16x128xf32>
      %c0_12 = arith.constant 0 : index
      %c0_13 = arith.constant 0 : index
      %13 = vector.load %arg5[%c0_12, %c0_13] : memref<1x128xf32, #tpu.memory_space<vmem>>, vector<1x128xf32>
      %14 = vector.broadcast %13 : vector<1x128xf32> to vector<16x128xf32>
      %15 = arith.addf %12, %14 : vector<16x128xf32>
      %16 = arith.truncf %15 : vector<16x128xf32> to vector<16x128xbf16>
      %c0_14 = arith.constant 0 : index
      %c0_15 = arith.constant 0 : index
      %17 = vector.load %arg6[%c0_14, %c0_15] : memref<16x128xbf16, #tpu.memory_space<vmem>>, vector<16x128xbf16>
      tpu.vector_store %arg6[%c0_14, %c0_15], %16 {strides = array<i32>} : memref<16x128xbf16, #tpu.memory_space<vmem>>, vector<16x128xbf16>,
    } else {
    }
    return
  }
  func.func @transform_0(%arg0: i32, %arg1: i32, %arg2: i32) -> (i32, i32) {
    %c0_i32 = arith.constant 0 : i32
    return %arg0, %arg2 : i32, i32
  }
  func.func @transform_1(%arg0: i32, %arg1: i32, %arg2: i32) -> (i32, i32) {
    %c0_i32 = arith.constant 0 : i32
    return %arg2, %arg1 : i32, i32
  }
  func.func @transform_2(%arg0: i32, %arg1: i32, %arg2: i32) -> (i32, i32) {
    %c0_i32 = arith.constant 0 : i32
    %c0_i32_0 = arith.constant 0 : i32
    return %c0_i32, %arg1 : i32, i32
  }
  func.func @transform_3(%arg0: i32, %arg1: i32, %arg2: i32) -> (i32, i32) {
    %c0_i32 = arith.constant 0 : i32
    return %arg0, %arg1 : i32, i32
  }
}

</mosaic_0001>

<llo_original>
// kernel: tpu_custom_call.1
$region0: #{tpu_custom_call.1}
  #allocation0 [shape = 'u32[]', space=smem, size = 0x4, offset = 0x4, fixed_abs, tag = 'smem constant byte address 0x4 - core index']
  #allocation1 [shape = 'u32[144,128]{1,0:T(1,128)}', space=vmem, size = 0x12000, scoped, tag = 'internal scratch']
  #allocation2 [shape = 'f32[16,128]{1,0:T(8,128)}', space=vmem, size = 0x2000, scoped, tag = 'scratch operand']
  %s0 = inlined_call_operand.hbm [shape: bf16[16,128], index: 0, kind: input, shape index: {}]
  %s1 = inlined_call_operand.hbm [shape: bf16[128,128], index: 1, kind: input, shape index: {}]
  %s2 = inlined_call_operand.vmem [shape: f32[1,128], index: 2, kind: input, shape index: {}]
  %s3 = inlined_call_operand.hbm [shape: bf16[16,128], index: 3, kind: output, shape index: {}]
  %s4 = sld [smem:[#allocation0]]
  $region38: #{tpu_custom_call.1} parent=0
    _
  %s6 = ssub.s32 1, %s4
  %s7 = scalar_select 0, %s6, %s4
  $region1: #{tpu_custom_call.1} parent=0
    #allocation3 [shape = 'u8[4096]{0}', space=vmem, size = 0x1000, scoped, tag = 'input window, operand 0, single buffered']
    #allocation4 [shape = 's32[1]{0}', space=sflag, size = 0x4, scoped, tag = 'scoped memory for tpu_custom_call.1']
    #allocation5 [shape = 's32[1]{0}', space=sflag, size = 0x4, scoped, tag = 'scoped memory for tpu_custom_call.1']
    #allocation6 [shape = 'u8[32768]{0}', space=vmem, size = 0x8000, scoped, tag = 'input window, operand 1, single buffered']
    #allocation7 [shape = 's32[1]{0}', space=sflag, size = 0x4, scoped, tag = 'scoped memory for tpu_custom_call.1']
    #allocation8 [shape = 'u8[4096]{0}', space=vmem, size = 0x1000, scoped, tag = 'output window, operand 0, single buffered']
    %8 = vsyncpa [#allocation4], 0
    %9 = vsyncpa [#allocation7], 0
    %10 = vsyncpa [#allocation5], 0
    // Predicated region
    $region2: #{tpu_custom_call.1} parent=1 // pred_check
      _
    $region3: #{tpu_custom_call.1} parent=1 // pred_check_branch
      %12 = sbr.rel (0) target = $region5
    $region4: #{tpu_custom_call.1} parent=1 // pred_region
      %s14 = ssub.s32 128, 128
      %15 = vsyncadd [#allocation4], %s14
      %s16 = sshll.u32 [#allocation3], 4
      %s17 = int_to_ptr.vmem [resolvable:$true] %s16
      %22 = dma.hbm_to_vmem [thread:$0]  %s0, 128, %s17, [#allocation4], 64, 64, 4
    $region5: #{tpu_custom_call.1} parent=1 // pred_fallthru
      _
    // Predicated region
    $region6: #{tpu_custom_call.1} parent=1 // pred_check
      _
    $region7: #{tpu_custom_call.1} parent=1 // pred_check_branch
      %24 = sbr.rel (0) target = $region9
    $region8: #{tpu_custom_call.1} parent=1 // pred_region
      %s26 = ssub.s32 1024, 1024
      %27 = vsyncadd [#allocation7], %s26
      %s28 = sshll.u32 [#allocation6], 4
      %s29 = int_to_ptr.vmem [resolvable:$true] %s28
      %34 = dma.hbm_to_vmem [thread:$0]  %s1, 1024, %s29, [#allocation7], 64, 64, 4
    $region9: #{tpu_custom_call.1} parent=1 // pred_fallthru
      _
    // Predicated region
    $region10: #{tpu_custom_call.1} parent=1 // pred_check
      _
    $region11: #{tpu_custom_call.1} parent=1 // pred_check_branch
      %36 = sbr.rel (0) target = $region13
    $region12: #{tpu_custom_call.1} parent=1 // pred_region
      _
    $region13: #{tpu_custom_call.1} parent=1 // pred_fallthru
      _
    // Predicated region
    $region14: #{tpu_custom_call.1} parent=1 // pred_check
      _
    $region15: #{tpu_custom_call.1} parent=1 // pred_check_branch
      %38 = sbr.rel (0) target = $region17
    $region16: #{tpu_custom_call.1} parent=1 // pred_region
      %39 = dma.done [#allocation4], 128
    $region17: #{tpu_custom_call.1} parent=1 // pred_fallthru
      _
    // Predicated region
    $region18: #{tpu_custom_call.1} parent=1 // pred_check
      _
    $region19: #{tpu_custom_call.1} parent=1 // pred_check_branch
      %41 = sbr.rel (0) target = $region21
    $region20: #{tpu_custom_call.1} parent=1 // pred_region
      %42 = dma.done [#allocation7], 1024
    $region21: #{tpu_custom_call.1} parent=1 // pred_fallthru
      _
    %p44 = scmp.eq.s32.totalorder 0, 0
    // Predicated region
    $region22: #{tpu_custom_call.1} parent=1 // pred_check
      %p45 = pneg %p44
    $region23: #{tpu_custom_call.1} parent=1 // pred_check_branch
      %47 = sbr.rel (%p45) target = $region25
    $region24: #{tpu_custom_call.1} parent=1 // pred_region
      %48 = vst [vmem:[#allocation2] sm:$0xff] 0.0
      %49 = vst [vmem:[#allocation2 + $0x8] sm:$0xff] 0.0
    $region25: #{tpu_custom_call.1} parent=1 // pred_fallthru
      _
    %v50 = vld [vmem:[#allocation2] sm:$0xff]
    %v51 = vld [vmem:[#allocation2 + $0x8] sm:$0xff]
    %v52 = vld [vmem:[#allocation3] sm:$0xf]
    %v53 = vld [vmem:[#allocation3 + $0x4] sm:$0xf]
    %v54 = vld [vmem:[#allocation6] sm:$0xf]
    %v55 = vld [vmem:[#allocation6 + $0x4] sm:$0xf]
    %v56 = vld [vmem:[#allocation6 + $0x8] sm:$0xf]
    %v57 = vld [vmem:[#allocation6 + $0xc] sm:$0xf]
    %v58 = vld [vmem:[#allocation6 + $0x10] sm:$0xf]
    %v59 = vld [vmem:[#allocation6 + $0x14] sm:$0xf]
    %v60 = vld [vmem:[#allocation6 + $0x18] sm:$0xf]
    %v61 = vld [vmem:[#allocation6 + $0x1c] sm:$0xf]
    %v62 = vld [vmem:[#allocation6 + $0x20] sm:$0xf]
    %v63 = vld [vmem:[#allocation6 + $0x24] sm:$0xf]
    %v64 = vld [vmem:[#allocation6 + $0x28] sm:$0xf]
    %v65 = vld [vmem:[#allocation6 + $0x2c] sm:$0xf]
    %v66 = vld [vmem:[#allocation6 + $0x30] sm:$0xf]
    %v67 = vld [vmem:[#allocation6 + $0x34] sm:$0xf]
    %v68 = vld [vmem:[#allocation6 + $0x38] sm:$0xf]
    %v69 = vld [vmem:[#allocation6 + $0x3c] sm:$0xf]
    %v72 = vunpack.c.l.b16 %v52
    %v73 = vunpack.c.l.b16 %v53
    %v74 = vpack.c.b16 %v73, %v72
    %v92 = vunpack.c.l.b16 %v54
    %v93 = vunpack.c.l.b16 %v55
    %v94 = vunpack.c.l.b16 %v56
    %v95 = vunpack.c.l.b16 %v57
    %v96 = vunpack.c.l.b16 %v58
    %v97 = vunpack.c.l.b16 %v59
    %v98 = vunpack.c.l.b16 %v60
    %v99 = vunpack.c.l.b16 %v61
    %v100 = vunpack.c.l.b16 %v62
    %v101 = vunpack.c.l.b16 %v63
    %v102 = vunpack.c.l.b16 %v64
    %v103 = vunpack.c.l.b16 %v65
    %v104 = vunpack.c.l.b16 %v66
    %v105 = vunpack.c.l.b16 %v67
    %v106 = vunpack.c.l.b16 %v68
    %v107 = vunpack.c.l.b16 %v69
    %v108 = vpack.c.b16 %v93, %v92
    %v109 = vpack.c.b16 %v95, %v94
    %v110 = vpack.c.b16 %v97, %v96
    %v111 = vpack.c.b16 %v99, %v98
    %v112 = vpack.c.b16 %v101, %v100
    %v113 = vpack.c.b16 %v103, %v102
    %v114 = vpack.c.b16 %v105, %v104
    %v115 = vpack.c.b16 %v107, %v106
    %124 = vmatprep.subr.bf16.mxu0 0
    %125 = vmatpush1.bf16.msra.mxu0 %v108
    %126 = vmatprep.subr.bf16.mxu0 0
    %127 = vmatpush1.bf16.msra.mxu0 %v109
    %128 = vmatprep.subr.bf16.mxu0 0
    %129 = vmatpush1.bf16.msra.mxu0 %v110
    %130 = vmatprep.subr.bf16.mxu0 0
    %131 = vmatpush1.bf16.msra.mxu0 %v111
    %132 = vmatprep.subr.bf16.mxu0 0
    %133 = vmatpush1.bf16.msra.mxu0 %v112
    %134 = vmatprep.subr.bf16.mxu0 0
    %135 = vmatpush1.bf16.msra.mxu0 %v113
    %136 = vmatprep.subr.bf16.mxu0 0
    %137 = vmatpush1.bf16.msra.mxu0 %v114
    %138 = vmatprep.subr.bf16.mxu0 0
    %139 = vmatpush1.bf16.msra.mxu0 %v115
    %140 = vmatprep.subr.bf16.mxu0 0
    %141 = vmatpush1.bf16.msra.mxu0 0
    %142 = vmatprep.subr.bf16.mxu0 0
    %143 = vmatpush1.bf16.msra.mxu0 0
    %144 = vmatprep.subr.bf16.mxu0 0
    %145 = vmatpush1.bf16.msra.mxu0 0
    %146 = vmatprep.subr.bf16.mxu0 0
    %147 = vmatpush1.bf16.msra.mxu0 0
    %148 = vmatprep.subr.bf16.mxu0 0
    %149 = vmatpush1.bf16.msra.mxu0 0
    %150 = vmatprep.subr.bf16.mxu0 0
    %151 = vmatpush1.bf16.msra.mxu0 0
    %152 = vmatprep.subr.bf16.mxu0 0
    %153 = vmatpush1.bf16.msra.mxu0 0
    %154 = vmatprep.subr.bf16.mxu0 0
    %155 = vmatpush1.bf16.msra.mxu0 0
    %156 = vmatprep.mubr.bf16.mxu0 0
    %157 = vmatmul.mubr.bf16.gmra.mrb[0].mxu0 %v74
    %v158 = vpop.f32.mrb[0].mxu0
    %v159 = vadd.f32 0.0, %v158
    %v160 = vpop.f32.mrb[0].mxu0
    %v161 = vpop.f32.mrb[0].mxu0
    %v162 = vadd.f32 0.0, %v161
    %v163 = vpop.f32.mrb[0].mxu0
    %164 = vdwg.mxu0
    %v165 = vadd.f32 %v50, %v159
    %v166 = vadd.f32 %v51, %v162
    %167 = vst [vmem:[#allocation2] sm:$0xff] %v165
    %168 = vst [vmem:[#allocation2 + $0x8] sm:$0xff] %v166
    // Predicated region
    $region26: #{tpu_custom_call.1} parent=1 // pred_check
      %p169 = pneg %p44
    $region27: #{tpu_custom_call.1} parent=1 // pred_check_branch
      %171 = sbr.rel (%p169) target = $region29
    $region28: #{tpu_custom_call.1} parent=1 // pred_region
      %v172 = vld [vmem:[#allocation2] sm:$0xff]
      %v173 = vld [vmem:[#allocation2 + $0x8] sm:$0xff]
      %v174 = vld [vmem:[%s2] sm:$0x1]
      %v176 = vlaneseq
      %v177 = vshrl.u32 %v176, 7
      %v178 = vsub.s32 0, %v177
      %v179 = vrot.slane %v174, %v178
      %v181 = vadd.f32 %v172, %v179
      %v182 = vadd.f32 %v173, %v179
      %v183 = vpack.c.bf16 %v182, %v181
      %v185 = vunpack.c.l.b16 %v183
      %v186 = vunpack.c.h.b16 %v183
      %v187 = vpack.c.b16 %v185, %v185
      %v188 = vpack.c.b16 %v186, %v186
      %191 = vst [vmem:[#allocation8] sm:$0xf] %v187
      %192 = vst [vmem:[#allocation8 + $0x4] sm:$0xf] %v188
    $region29: #{tpu_custom_call.1} parent=1 // pred_fallthru
      _
    // Predicated region
    $region30: #{tpu_custom_call.1} parent=1 // pred_check
      _
    $region31: #{tpu_custom_call.1} parent=1 // pred_check_branch
      %194 = sbr.rel (0) target = $region33
    $region32: #{tpu_custom_call.1} parent=1 // pred_region
      %s196 = ssub.s32 128, 128
      %197 = vsyncadd [#allocation5], %s196
      %s198 = sshll.u32 [#allocation8], 4
      %s199 = int_to_ptr.vmem [resolvable:$true] %s198
      %204 = dma.vmem_to_hbm [thread:$0]  %s199, 128, %s3, [#allocation5], 64, 64, 4
    $region33: #{tpu_custom_call.1} parent=1 // pred_fallthru
      _
    // Predicated region
    $region34: #{tpu_custom_call.1} parent=1 // pred_check
      _
    $region35: #{tpu_custom_call.1} parent=1 // pred_check_branch
      %206 = sbr.rel (0) target = $region37
    $region36: #{tpu_custom_call.1} parent=1 // pred_region
      %207 = dma.done [#allocation5], 128
    $region37: #{tpu_custom_call.1} parent=1 // pred_fallthru
      _
    %208 = vsyncpa [#allocation4], 1
    %209 = vsyncpa [#allocation7], 1
    %210 = vsyncpa [#allocation5], 1

</llo_original>
